<compile_context>
chip_gen: v7x
topology: tpu7x:2x2x1
jax: 0.10.0
libtpu: 0.0.40
codegen_flags: <defaults>
</compile_context>

<pallas_src>
import functools

import jax
import jax.numpy as jnp
from jax import lax
from jax.experimental import pallas as pl
from jax.experimental.pallas import tpu as pltpu

_VMEM_LIMIT = 32 * 1024 * 1024  # safe on v5e/v6e (128 MiB) and v7x (64 MiB)


def _round_up(x, m):
    return ((x + m - 1) // m) * m


def _pick_batch_tile(B, max_bt=128):
    """Sublane-aligned batch tile; >= 2 tiles when possible (v7x 2-TC sharding)."""
    if B <= 8:
        return B
    return min(max_bt, _round_up((B + 1) // 2, 8))


def _supports_bf16_vpu():
    """bf16 VALU exists on v6e / v7x; v5e and older do VPU math in f32."""
    try:
        kind = jax.devices()[0].device_kind.lower()
    except Exception:
        return False
    return ("v6" in kind) or ("v7" in kind) or ("7x" in kind)


# ---------------------------------------------------------------------------
# Small-vocabulary path: one-hot scatter tile reduced on the MXU.
#
# grid = (ceil(B/bt), Vp/vt); vocabulary axis is the (last) reduction axis.
#   S[b, v] = sum_f [ind[b,f] == v] * w[b,f]   (full-vreg VPU ops)
#   acc    += S @ E[v_tile]                    (MXU, f32 accumulate)
# Epilogue (last V step): out = relu(acc @ W + bias) + acc
# ---------------------------------------------------------------------------
def _scatter_encode_kernel(ind_ref, w_ref, e_ref, lw_ref, lb_ref, o_ref,
                           acc_ref, *, sdtype):
    j = pl.program_id(1)

    @pl.when(j == 0)
    def _init():
        acc_ref[...] = jnp.zeros_like(acc_ref)

    bt, F = ind_ref.shape
    vt = e_ref.shape[0]

    ind = ind_ref[...]                                 # (bt, F) int32
    w = w_ref[...].astype(sdtype)                      # (bt, F) bf16 (v6e/v7x) / f32 (v5e)

    # Local ids (0..vt-1) so the iota can be rematerialized cheaply; shift the
    # indices instead of the iota.
    local_ids = lax.broadcasted_iota(jnp.int32, (bt, vt), 1)
    ind_local = ind - j * vt

    # Two partial accumulators break the 2*F-deep dependent chain so the four
    # VALU slots can fill.  F is a small static int here (large F routes to the
    # gather path), so this fully unrolls.
    n_parts = 2 if F >= 2 else 1
    parts = [jnp.zeros((bt, vt), sdtype) for _ in range(n_parts)]
    for f in range(F):
        sel = local_ids == ind_local[:, f:f + 1]
        parts[f % n_parts] = parts[f % n_parts] + jnp.where(sel, w[:, f:f + 1], 0.0)
    s = parts[0]
    for p in parts[1:]:
        s = s + p

    # MXU reduction over this vocabulary tile (bf16 inputs, f32 accumulate).
    acc_ref[...] += jnp.dot(s.astype(e_ref.dtype), e_ref[...],
                            preferred_element_type=jnp.float32)

    @pl.when(j == pl.num_programs(1) - 1)
    def _epilogue():
        rep = acc_ref[...]                             # (bt, D) f32
        h = jnp.dot(rep.astype(lw_ref.dtype), lw_ref[...],
                    preferred_element_type=jnp.float32) + lb_ref[...]
        o_ref[...] = jnp.maximum(h, 0.0) + rep


def scatter_sparse_encode(X_ind, X_w, Ep, W, b, *, vt, sdtype):
    """out = relu(rep @ W + b) + rep, rep[b] = sum_f X_w[b,f] * E[X_ind[b,f]].

    Ep is already padded to a multiple of vt rows (done once at model init).
    """
    B, F = X_ind.shape
    Vp, D = Ep.shape
    # Cap at 64 so the (bt, vt) scatter tiles + iota stay within the vreg file.
    bt = min(64, _pick_batch_tile(B))
    grid = (pl.cdiv(B, bt), Vp // vt)                  # reduction axis last
    kernel = functools.partial(_scatter_encode_kernel, sdtype=sdtype)
    return pl.pallas_call(
        kernel,
        out_shape=jax.ShapeDtypeStruct((B, D), jnp.float32),
        grid=grid,
        in_specs=[
            pl.BlockSpec((bt, F), lambda i, j: (i, 0)),   # X_ind tile
            pl.BlockSpec((bt, F), lambda i, j: (i, 0)),   # X_w  tile
            pl.BlockSpec((vt, D), lambda i, j: (j, 0)),   # E reduction tile
            pl.BlockSpec((D, D), lambda i, j: (0, 0)),    # W (resident)
            pl.BlockSpec((1, D), lambda i, j: (0, 0)),    # bias (resident)
        ],
        out_specs=pl.BlockSpec((bt, D), lambda i, j: (i, 0)),
        scratch_shapes=[pltpu.VMEM((bt, D), jnp.float32)],   # resident rep acc
        compiler_params=pltpu.CompilerParams(
            dimension_semantics=("parallel", "arbitrary"),
            vmem_limit_bytes=_VMEM_LIMIT),
    )(X_ind.astype(jnp.int32), X_w.astype(jnp.float32), Ep, W, b.reshape(1, D))


# ---------------------------------------------------------------------------
# Large-vocabulary path: scalar-prefetch + manual DMA row gather of E.
#
# grid = (ceil(B/bt),), "parallel".  X_ind lives in SMEM (scalar prefetch) and
# addresses per-row DMAs from E (HBM, pl.ANY) into a double-buffered VMEM
# staging block of up to `feat_chunk` feature columns at a time.  All row DMAs
# of a chunk signal one DMA semaphore; a single wait for the combined byte
# count (the ragged-paged-attention pattern) releases once they all land.
# Work is O(B*F*D) — independent of V.
# ---------------------------------------------------------------------------
def _gather_encode_kernel(ind_ref, w_ref, e_hbm, lw_ref, lb_ref, o_ref,
                          stage_ref, sem_ref, *, feat_chunk):
    i = pl.program_id(0)
    bt, F = w_ref.shape
    D = o_ref.shape[1]
    Vp = e_hbm.shape[0]
    base = i * (bt * F)
    n_chunks = (F + feat_chunk - 1) // feat_chunk

    def issue_chunk(c, slot):
        f0 = c * feat_chunk
        csize = min(feat_chunk, F - f0)
        for k in range(csize):                          # static unroll over features
            f = f0 + k

            def body(bb, carry, _f=f, _k=k, _slot=slot):
                row = ind_ref[base + bb * F + _f]
                row = jnp.clip(row, 0, Vp - 1)          # DMA-safety clamp
                pltpu.make_async_copy(
                    e_hbm.at[pl.ds(row, 1)],            # (1, D) HBM row
                    stage_ref.at[_slot, _k, pl.ds(bb, 1)],
                    sem_ref.at[_slot]).start()
                return carry

            lax.fori_loop(0, bt, body, 0, unroll=4)

    def wait_chunk(c, slot):
        csize = min(feat_chunk, F - c * feat_chunk)
        # All csize*bt row copies of `slot` signal the same semaphore; one wait
        # sized as the full staged block (same total byte count) drains it.
        blk = stage_ref.at[slot, pl.ds(0, csize)]
        pltpu.make_async_copy(blk, blk, sem_ref.at[slot]).wait()

    w = w_ref[...]                                      # (bt, F) f32
    rep = jnp.zeros((bt, D), jnp.float32)

    issue_chunk(0, 0)
    for c in range(n_chunks):                           # static chunk loop
        slot = c % 2
        if c + 1 < n_chunks:
            issue_chunk(c + 1, 1 - slot)                # prefetch next chunk
        wait_chunk(c, slot)
        f0 = c * feat_chunk
        csize = min(feat_chunk, F - f0)
        for k in range(csize):                          # static: weighted sum
            rep = rep + w[:, f0 + k:f0 + k + 1] * stage_ref[slot, k].astype(jnp.float32)

    h = jnp.dot(rep.astype(lw_ref.dtype), lw_ref[...],
                preferred_element_type=jnp.float32) + lb_ref[...]
    o_ref[...] = jnp.maximum(h, 0.0) + rep


def gather_sparse_encode(X_ind, X_w, Ep, W, b, *, feat_chunk=32):
    B, F = X_ind.shape
    Vp, D = Ep.shape
    bt = _pick_batch_tile(B, max_bt=128)
    Bp = _round_up(B, bt)
    if Bp != B:
        # Pad with index 0 / weight 0 so manual SMEM reads stay in-bounds.
        X_ind = jnp.pad(X_ind, ((0, Bp - B), (0, 0)))
        X_w = jnp.pad(X_w, ((0, Bp - B), (0, 0)))
    fc = min(feat_chunk, F)
    kernel = functools.partial(_gather_encode_kernel, feat_chunk=fc)
    # TODO(synk): for very large B*F the flattened X_ind scalar-prefetch may
    #             exceed SMEM; chunk the batch at the wrapper level then.
    out = pl.pallas_call(
        kernel,
        out_shape=jax.ShapeDtypeStruct((Bp, D), jnp.float32),
        grid_spec=pltpu.PrefetchScalarGridSpec(
            num_scalar_prefetch=1,
            grid=(Bp // bt,),
            in_specs=[
                pl.BlockSpec((bt, F), lambda i, ind: (i, 0)),    # X_w tile
                pl.BlockSpec(memory_space=pl.ANY),               # E stays in HBM
                pl.BlockSpec((D, D), lambda i, ind: (0, 0)),     # W (resident)
                pl.BlockSpec((1, D), lambda i, ind: (0, 0)),     # bias (resident)
            ],
            out_specs=pl.BlockSpec((bt, D), lambda i, ind: (i, 0)),
            scratch_shapes=[
                pltpu.VMEM((2, fc, bt, D), Ep.dtype),   # double-buffered gather stage
                pltpu.SemaphoreType.DMA((2,)),
            ]),
        compiler_params=pltpu.CompilerParams(
            dimension_semantics=("parallel",),
            vmem_limit_bytes=_VMEM_LIMIT),
    )(X_ind.reshape(-1).astype(jnp.int32), X_w.astype(jnp.float32), Ep, W,
      b.reshape(1, D))
    return out[:B] if Bp != B else out


# ---------------------------------------------------------------------------
# Dense-feature path: batch-tiled residual Linear + ReLU block.
#   out = relu(x @ W + b) + x
# ---------------------------------------------------------------------------
def _residual_relu_kernel(x_ref, w_ref, b_ref, o_ref):
    x = x_ref[...]
    h = jnp.dot(x.astype(w_ref.dtype), w_ref[...],
                preferred_element_type=jnp.float32) + b_ref[...]
    o_ref[...] = jnp.maximum(h, 0.0) + x.astype(jnp.float32)


def residual_relu(x, W, b):
    B, D = x.shape
    blk = _pick_batch_tile(B, max_bt=256)
    return pl.pallas_call(
        _residual_relu_kernel,
        out_shape=jax.ShapeDtypeStruct((B, D), jnp.float32),
        grid=(pl.cdiv(B, blk),),
        in_specs=[
            pl.BlockSpec((blk, D), lambda i: (i, 0)),
            pl.BlockSpec((D, D), lambda i: (0, 0)),
            pl.BlockSpec((1, D), lambda i: (0, 0)),
        ],
        out_specs=pl.BlockSpec((blk, D), lambda i: (i, 0)),
        compiler_params=pltpu.CompilerParams(
            dimension_semantics=("parallel",),
            vmem_limit_bytes=_VMEM_LIMIT),
    )(x, W, b.reshape(1, D))


# ---------------------------------------------------------------------------
# Module wrapper mirroring DeepXMLs (coarse transform + Identity classifier)
# ---------------------------------------------------------------------------
class DeepXMLsPallas:
    """Pallas port of DeepXMLs' forward: classifier o transform."""

    def __init__(self, vocabulary_dims, embedding_dims, key, padding_idx=0,
                 param_dtype=jnp.bfloat16,
                 scatter_max_vocab=4096, scatter_max_features=64):
        k_emb, k_lin = jax.random.split(key)
        V, D = vocabulary_dims, embedding_dims
        self.V, self.D = V, D

        E = 0.05 * jax.random.normal(k_emb, (V, D), jnp.float32)
        # padding_idx row must stay zero to preserve PyTorch Embedding
        # padding semantics (re-zero it if E is ever updated in training).
        E = E.at[padding_idx].set(0.0)

        # Scatter-tile dtype: bf16 on bf16-VPU chips (v6e/v7x), f32 on v5e.
        self.scatter_dtype = jnp.bfloat16 if _supports_bf16_vpu() else jnp.float32
        vt = 512 if self.scatter_dtype == jnp.bfloat16 else 256
        self.vt = min(vt, _round_up(V, 128))

        # Pad E ONCE at init so the scatter path never pays a per-forward
        # V*D HBM copy; padded rows are zero and never selected.
        Vp = _round_up(V, self.vt)
        if Vp != V:
            E = jnp.pad(E, ((0, Vp - V), (0, 0)))

        # bf16 params: halve HBM/VMEM traffic, MXU-native on v5e/v6e/v7x.
        # All accumulation stays f32 inside the kernels.
        self.E = E.astype(param_dtype)
        W = jax.random.normal(k_lin, (D, D), jnp.float32) / jnp.sqrt(jnp.float32(D))
        self.W = W.astype(param_dtype)
        self.b = jnp.zeros((D,), jnp.float32)
        self.representation_dims = D

        self.scatter_max_vocab = scatter_max_vocab
        self.scatter_max_features = scatter_max_features

    # nn.Identity classifier
    # TODO(synk): real DeepXMLs classifier is a shortlist SparseLinear over
    #             params.num_labels / Y_s (external config).
    def _classifier(self, x):
        return x

    # transform(...)
    def encode(self, x):
        X_w, X_ind = x
        if X_ind is None:
            # Dense-feature path.
            return residual_relu(X_w, self.W, self.b)
        B, F = X_ind.shape
        if self.V <= self.scatter_max_vocab and F <= self.scatter_max_features:
            # Small vocabulary: one-hot scatter + MXU reduction.
            return scatter_sparse_encode(X_ind, X_w, self.E, self.W, self.b,
                                         vt=self.vt, sdtype=self.scatter_dtype)
        # Realistic vocabulary: scalar-prefetch DMA gather of E rows.
        return gather_sparse_encode(X_ind, X_w, self.E, self.W, self.b)

    def forward(self, batch_data):
        return self._classifier(self.encode((batch_data['X'],
                                             batch_data['X_ind'])))


if __name__ == "__main__":
    key = jax.random.PRNGKey(0)
    (k_ind, k_w, k_params, k_dense,
     k_ind2, k_w2, k_params2) = jax.random.split(key, 7)

    B, F, D = 8, 16, 128

    # ---- small-vocabulary model: scatter (one-hot @ E) path ----
    V = 64
    X_ind = jax.random.randint(k_ind, (B, F), 0, V, dtype=jnp.int32)
    X_w = jax.random.uniform(k_w, (B, F), dtype=jnp.float32)
    model = DeepXMLsPallas(V, D, k_params)
    out = jax.block_until_ready(model.forward({'X': X_w, 'X_ind': X_ind}))

    E32 = model.E.astype(jnp.float32)[:V]
    W32 = model.W.astype(jnp.float32)
    rep_ref = jnp.einsum('bf,bfd->bd', X_w, E32[X_ind])
    ref = jnp.maximum(rep_ref @ W32 + model.b, 0.0) + rep_ref
    assert out.shape == (B, D), out.shape
    assert out.dtype == jnp.float32
    assert jnp.allclose(out, ref, atol=2e-2, rtol=2e-2), float(
        jnp.max(jnp.abs(out - ref)))

    # ---- large-vocabulary model: scalar-prefetch DMA-gather path ----
    V2 = 8192
    model2 = DeepXMLsPallas(V2, D, k_params2)
    X_ind2 = jax.random.randint(k_ind2, (B, F), 0, V2, dtype=jnp.int32)
    X_w2 = jax.random.uniform(k_w2, (B, F), dtype=jnp.float32)
    out2 = jax.block_until_ready(model2.forward({'X': X_w2, 'X_ind': X_ind2}))

    E32_2 = model2.E.astype(jnp.float32)[:V2]
    W32_2 = model2.W.astype(jnp.float32)
    rep2 = jnp.einsum('bf,bfd->bd', X_w2, E32_2[X_ind2])
    ref2 = jnp.maximum(rep2 @ W32_2 + model2.b, 0.0) + rep2
    assert out2.shape == (B, D), out2.shape
    assert jnp.allclose(out2, ref2, atol=2e-2, rtol=2e-2), float(
        jnp.max(jnp.abs(out2 - ref2)))

    # ---- dense-feature path (X_ind is None) ----
    X_dense = jax.random.normal(k_dense, (B, D), jnp.float32)
    out_d = jax.block_until_ready(model.forward({'X': X_dense, 'X_ind': None}))
    ref_d = jnp.maximum(X_dense @ W32 + model.b, 0.0) + X_dense
    assert jnp.allclose(out_d, ref_d, atol=2e-2, rtol=2e-2), float(
        jnp.max(jnp.abs(out_d - ref_d)))

    print("KERNEL_OK")
</pallas_src>

<mosaic_0001>
module attributes {stable_mosaic.version = 11 : i64} {
  func.func @_scatter_encode_kernel(%arg0: i32, %arg1: i32, %arg2: memref<8x16xi32, #tpu.memory_space<vmem>>, %arg3: memref<8x16xf32, #tpu.memory_space<vmem>>, %arg4: memref<128x128xbf16, #tpu.memory_space<vmem>>, %arg5: memref<128x128xbf16, #tpu.memory_space<vmem>>, %arg6: memref<1x128xf32, #tpu.memory_space<vmem>>, %arg7: memref<8x128xf32, #tpu.memory_space<vmem>>, %arg8: memref<8x128xf32, #tpu.memory_space<vmem>>) attributes {dimension_semantics = [#tpu.dimension_semantics<parallel>, #tpu.dimension_semantics<arbitrary>], iteration_bounds = array<i64: 1, 1>, scalar_prefetch = 0 : i64, scratch_operands = 1 : i64, tpu.core_type = #tpu.core_type<tc>, window_params = [{transform_indices = @transform_0, window_bounds = array<i64: 8, 16>}, {transform_indices = @transform_1, window_bounds = array<i64: 8, 16>}, {transform_indices = @transform_2, window_bounds = array<i64: 128, 128>}, {pipeline_mode = #tpu.pipeline_mode<synchronous>, transform_indices = @transform_3, window_bounds = array<i64: 128, 128>}, {pipeline_mode = #tpu.pipeline_mode<synchronous>, transform_indices = @transform_4, window_bounds = array<i64: 1, 128>}, {transform_indices = @transform_5, window_bounds = array<i64: 8, 128>}]} {
    %c0_i32 = arith.constant 0 : i32
    %0 = arith.cmpi eq, %arg1, %c0_i32 : i32
    %1 = arith.extui %0 : i1 to i32
    %c0_i32_0 = arith.constant 0 : i32
    %2 = arith.cmpi ne, %1, %c0_i32_0 : i32
    scf.if %2 {
      %cst_30 = arith.constant 0.000000e+00 : f32
      %165 = vector.broadcast %cst_30 : f32 to vector<8x128xf32>
      %c0_31 = arith.constant 0 : index
      %c0_32 = arith.constant 0 : index
      %166 = vector.load %arg8[%c0_31, %c0_32] : memref<8x128xf32, #tpu.memory_space<vmem>>, vector<8x128xf32>
      tpu.vector_store %arg8[%c0_31, %c0_32], %165 {strides = array<i32>} : memref<8x128xf32, #tpu.memory_space<vmem>>, vector<8x128xf32>,
    } else {
    }
    %c0 = arith.constant 0 : index
    %c0_1 = arith.constant 0 : index
    %3 = vector.load %arg2[%c0, %c0_1] : memref<8x16xi32, #tpu.memory_space<vmem>>, vector<8x16xi32>
    %c0_2 = arith.constant 0 : index
    %c0_3 = arith.constant 0 : index
    %4 = vector.load %arg3[%c0_2, %c0_3] : memref<8x16xf32, #tpu.memory_space<vmem>>, vector<8x16xf32>
    %5 = tpu.iota {dimensions = array<i32: 1>} : vector<8x128xi32>
    %c128_i32 = arith.constant 128 : i32
    %6 = arith.muli %arg1, %c128_i32 : i32
    %7 = vector.broadcast %6 : i32 to vector<8x16xi32>
    %8 = arith.subi %3, %7 : vector<8x16xi32>
    %cst = arith.constant 0.000000e+00 : f32
    %9 = vector.broadcast %cst : f32 to vector<8x128xf32>
    %cst_4 = arith.constant 0.000000e+00 : f32
    %10 = vector.broadcast %cst_4 : f32 to vector<8x128xf32>
    %11 = vector.extract_strided_slice %8 {offsets = [0, 0], sizes = [8, 1], strides = [1, 1]} : vector<8x16xi32> to vector<8x1xi32>
    %12 = vector.broadcast %11 : vector<8x1xi32> to vector<8x128xi32>
    %13 = arith.cmpi eq, %5, %12 : vector<8x128xi32>
    %14 = vector.extract_strided_slice %4 {offsets = [0, 0], sizes = [8, 1], strides = [1, 1]} : vector<8x16xf32> to vector<8x1xf32>
    %cst_5 = arith.constant 0.000000e+00 : f32
    %15 = vector.shape_cast %14 : vector<8x1xf32> to vector<8x1xf32>
    %16 = vector.broadcast %15 : vector<8x1xf32> to vector<8x128xf32>
    %17 = vector.broadcast %cst_5 : f32 to vector<8x128xf32>
    %18 = arith.select %13, %16, %17 : vector<8x128xi1>, vector<8x128xf32>
    %19 = arith.addf %9, %18 : vector<8x128xf32>
    %20 = vector.extract_strided_slice %8 {offsets = [0, 1], sizes = [8, 1], strides = [1, 1]} : vector<8x16xi32> to vector<8x1xi32>
    %21 = vector.broadcast %20 : vector<8x1xi32> to vector<8x128xi32>
    %22 = arith.cmpi eq, %5, %21 : vector<8x128xi32>
    %23 = vector.extract_strided_slice %4 {offsets = [0, 1], sizes = [8, 1], strides = [1, 1]} : vector<8x16xf32> to vector<8x1xf32>
    %cst_6 = arith.constant 0.000000e+00 : f32
    %24 = vector.shape_cast %23 : vector<8x1xf32> to vector<8x1xf32>
    %25 = vector.broadcast %24 : vector<8x1xf32> to vector<8x128xf32>
    %26 = vector.broadcast %cst_6 : f32 to vector<8x128xf32>
    %27 = arith.select %22, %25, %26 : vector<8x128xi1>, vector<8x128xf32>
    %28 = arith.addf %10, %27 : vector<8x128xf32>
    %29 = vector.extract_strided_slice %8 {offsets = [0, 2], sizes = [8, 1], strides = [1, 1]} : vector<8x16xi32> to vector<8x1xi32>
    %30 = vector.broadcast %29 : vector<8x1xi32> to vector<8x128xi32>
    %31 = arith.cmpi eq, %5, %30 : vector<8x128xi32>
    %32 = vector.extract_strided_slice %4 {offsets = [0, 2], sizes = [8, 1], strides = [1, 1]} : vector<8x16xf32> to vector<8x1xf32>
    %cst_7 = arith.constant 0.000000e+00 : f32
    %33 = vector.shape_cast %32 : vector<8x1xf32> to vector<8x1xf32>
    %34 = vector.broadcast %33 : vector<8x1xf32> to vector<8x128xf32>
    %35 = vector.broadcast %cst_7 : f32 to vector<8x128xf32>
    %36 = arith.select %31, %34, %35 : vector<8x128xi1>, vector<8x128xf32>
    %37 = arith.addf %19, %36 : vector<8x128xf32>
    %38 = vector.extract_strided_slice %8 {offsets = [0, 3], sizes = [8, 1], strides = [1, 1]} : vector<8x16xi32> to vector<8x1xi32>
    %39 = vector.broadcast %38 : vector<8x1xi32> to vector<8x128xi32>
    %40 = arith.cmpi eq, %5, %39 : vector<8x128xi32>
    %41 = vector.extract_strided_slice %4 {offsets = [0, 3], sizes = [8, 1], strides = [1, 1]} : vector<8x16xf32> to vector<8x1xf32>
    %cst_8 = arith.constant 0.000000e+00 : f32
    %42 = vector.shape_cast %41 : vector<8x1xf32> to vector<8x1xf32>
    %43 = vector.broadcast %42 : vector<8x1xf32> to vector<8x128xf32>
    %44 = vector.broadcast %cst_8 : f32 to vector<8x128xf32>
    %45 = arith.select %40, %43, %44 : vector<8x128xi1>, vector<8x128xf32>
    %46 = arith.addf %28, %45 : vector<8x128xf32>
    %47 = vector.extract_strided_slice %8 {offsets = [0, 4], sizes = [8, 1], strides = [1, 1]} : vector<8x16xi32> to vector<8x1xi32>
    %48 = vector.broadcast %47 : vector<8x1xi32> to vector<8x128xi32>
    %49 = arith.cmpi eq, %5, %48 : vector<8x128xi32>
    %50 = vector.extract_strided_slice %4 {offsets = [0, 4], sizes = [8, 1], strides = [1, 1]} : vector<8x16xf32> to vector<8x1xf32>
    %cst_9 = arith.constant 0.000000e+00 : f32
    %51 = vector.shape_cast %50 : vector<8x1xf32> to vector<8x1xf32>
    %52 = vector.broadcast %51 : vector<8x1xf32> to vector<8x128xf32>
    %53 = vector.broadcast %cst_9 : f32 to vector<8x128xf32>
    %54 = arith.select %49, %52, %53 : vector<8x128xi1>, vector<8x128xf32>
    %55 = arith.addf %37, %54 : vector<8x128xf32>
    %56 = vector.extract_strided_slice %8 {offsets = [0, 5], sizes = [8, 1], strides = [1, 1]} : vector<8x16xi32> to vector<8x1xi32>
    %57 = vector.broadcast %56 : vector<8x1xi32> to vector<8x128xi32>
    %58 = arith.cmpi eq, %5, %57 : vector<8x128xi32>
    %59 = vector.extract_strided_slice %4 {offsets = [0, 5], sizes = [8, 1], strides = [1, 1]} : vector<8x16xf32> to vector<8x1xf32>
    %cst_10 = arith.constant 0.000000e+00 : f32
    %60 = vector.shape_cast %59 : vector<8x1xf32> to vector<8x1xf32>
    %61 = vector.broadcast %60 : vector<8x1xf32> to vector<8x128xf32>
    %62 = vector.broadcast %cst_10 : f32 to vector<8x128xf32>
    %63 = arith.select %58, %61, %62 : vector<8x128xi1>, vector<8x128xf32>
    %64 = arith.addf %46, %63 : vector<8x128xf32>
    %65 = vector.extract_strided_slice %8 {offsets = [0, 6], sizes = [8, 1], strides = [1, 1]} : vector<8x16xi32> to vector<8x1xi32>
    %66 = vector.broadcast %65 : vector<8x1xi32> to vector<8x128xi32>
    %67 = arith.cmpi eq, %5, %66 : vector<8x128xi32>
    %68 = vector.extract_strided_slice %4 {offsets = [0, 6], sizes = [8, 1], strides = [1, 1]} : vector<8x16xf32> to vector<8x1xf32>
    %cst_11 = arith.constant 0.000000e+00 : f32
    %69 = vector.shape_cast %68 : vector<8x1xf32> to vector<8x1xf32>
    %70 = vector.broadcast %69 : vector<8x1xf32> to vector<8x128xf32>
    %71 = vector.broadcast %cst_11 : f32 to vector<8x128xf32>
    %72 = arith.select %67, %70, %71 : vector<8x128xi1>, vector<8x128xf32>
    %73 = arith.addf %55, %72 : vector<8x128xf32>
    %74 = vector.extract_strided_slice %8 {offsets = [0, 7], sizes = [8, 1], strides = [1, 1]} : vector<8x16xi32> to vector<8x1xi32>
    %75 = vector.broadcast %74 : vector<8x1xi32> to vector<8x128xi32>
    %76 = arith.cmpi eq, %5, %75 : vector<8x128xi32>
    %77 = vector.extract_strided_slice %4 {offsets = [0, 7], sizes = [8, 1], strides = [1, 1]} : vector<8x16xf32> to vector<8x1xf32>
    %cst_12 = arith.constant 0.000000e+00 : f32
    %78 = vector.shape_cast %77 : vector<8x1xf32> to vector<8x1xf32>
    %79 = vector.broadcast %78 : vector<8x1xf32> to vector<8x128xf32>
    %80 = vector.broadcast %cst_12 : f32 to vector<8x128xf32>
    %81 = arith.select %76, %79, %80 : vector<8x128xi1>, vector<8x128xf32>
    %82 = arith.addf %64, %81 : vector<8x128xf32>
    %83 = vector.extract_strided_slice %8 {offsets = [0, 8], sizes = [8, 1], strides = [1, 1]} : vector<8x16xi32> to vector<8x1xi32>
    %84 = vector.broadcast %83 : vector<8x1xi32> to vector<8x128xi32>
    %85 = arith.cmpi eq, %5, %84 : vector<8x128xi32>
    %86 = vector.extract_strided_slice %4 {offsets = [0, 8], sizes = [8, 1], strides = [1, 1]} : vector<8x16xf32> to vector<8x1xf32>
    %cst_13 = arith.constant 0.000000e+00 : f32
    %87 = vector.shape_cast %86 : vector<8x1xf32> to vector<8x1xf32>
    %88 = vector.broadcast %87 : vector<8x1xf32> to vector<8x128xf32>
    %89 = vector.broadcast %cst_13 : f32 to vector<8x128xf32>
    %90 = arith.select %85, %88, %89 : vector<8x128xi1>, vector<8x128xf32>
    %91 = arith.addf %73, %90 : vector<8x128xf32>
    %92 = vector.extract_strided_slice %8 {offsets = [0, 9], sizes = [8, 1], strides = [1, 1]} : vector<8x16xi32> to vector<8x1xi32>
    %93 = vector.broadcast %92 : vector<8x1xi32> to vector<8x128xi32>
    %94 = arith.cmpi eq, %5, %93 : vector<8x128xi32>
    %95 = vector.extract_strided_slice %4 {offsets = [0, 9], sizes = [8, 1], strides = [1, 1]} : vector<8x16xf32> to vector<8x1xf32>
    %cst_14 = arith.constant 0.000000e+00 : f32
    %96 = vector.shape_cast %95 : vector<8x1xf32> to vector<8x1xf32>
    %97 = vector.broadcast %96 : vector<8x1xf32> to vector<8x128xf32>
    %98 = vector.broadcast %cst_14 : f32 to vector<8x128xf32>
    %99 = arith.select %94, %97, %98 : vector<8x128xi1>, vector<8x128xf32>
    %100 = arith.addf %82, %99 : vector<8x128xf32>
    %101 = vector.extract_strided_slice %8 {offsets = [0, 10], sizes = [8, 1], strides = [1, 1]} : vector<8x16xi32> to vector<8x1xi32>
    %102 = vector.broadcast %101 : vector<8x1xi32> to vector<8x128xi32>
    %103 = arith.cmpi eq, %5, %102 : vector<8x128xi32>
    %104 = vector.extract_strided_slice %4 {offsets = [0, 10], sizes = [8, 1], strides = [1, 1]} : vector<8x16xf32> to vector<8x1xf32>
    %cst_15 = arith.constant 0.000000e+00 : f32
    %105 = vector.shape_cast %104 : vector<8x1xf32> to vector<8x1xf32>
    %106 = vector.broadcast %105 : vector<8x1xf32> to vector<8x128xf32>
    %107 = vector.broadcast %cst_15 : f32 to vector<8x128xf32>
    %108 = arith.select %103, %106, %107 : vector<8x128xi1>, vector<8x128xf32>
    %109 = arith.addf %91, %108 : vector<8x128xf32>
    %110 = vector.extract_strided_slice %8 {offsets = [0, 11], sizes = [8, 1], strides = [1, 1]} : vector<8x16xi32> to vector<8x1xi32>
    %111 = vector.broadcast %110 : vector<8x1xi32> to vector<8x128xi32>
    %112 = arith.cmpi eq, %5, %111 : vector<8x128xi32>
    %113 = vector.extract_strided_slice %4 {offsets = [0, 11], sizes = [8, 1], strides = [1, 1]} : vector<8x16xf32> to vector<8x1xf32>
    %cst_16 = arith.constant 0.000000e+00 : f32
    %114 = vector.shape_cast %113 : vector<8x1xf32> to vector<8x1xf32>
    %115 = vector.broadcast %114 : vector<8x1xf32> to vector<8x128xf32>
    %116 = vector.broadcast %cst_16 : f32 to vector<8x128xf32>
    %117 = arith.select %112, %115, %116 : vector<8x128xi1>, vector<8x128xf32>
    %118 = arith.addf %100, %117 : vector<8x128xf32>
    %119 = vector.extract_strided_slice %8 {offsets = [0, 12], sizes = [8, 1], strides = [1, 1]} : vector<8x16xi32> to vector<8x1xi32>
    %120 = vector.broadcast %119 : vector<8x1xi32> to vector<8x128xi32>
    %121 = arith.cmpi eq, %5, %120 : vector<8x128xi32>
    %122 = vector.extract_strided_slice %4 {offsets = [0, 12], sizes = [8, 1], strides = [1, 1]} : vector<8x16xf32> to vector<8x1xf32>
    %cst_17 = arith.constant 0.000000e+00 : f32
    %123 = vector.shape_cast %122 : vector<8x1xf32> to vector<8x1xf32>
    %124 = vector.broadcast %123 : vector<8x1xf32> to vector<8x128xf32>
    %125 = vector.broadcast %cst_17 : f32 to vector<8x128xf32>
    %126 = arith.select %121, %124, %125 : vector<8x128xi1>, vector<8x128xf32>
    %127 = arith.addf %109, %126 : vector<8x128xf32>
    %128 = vector.extract_strided_slice %8 {offsets = [0, 13], sizes = [8, 1], strides = [1, 1]} : vector<8x16xi32> to vector<8x1xi32>
    %129 = vector.broadcast %128 : vector<8x1xi32> to vector<8x128xi32>
    %130 = arith.cmpi eq, %5, %129 : vector<8x128xi32>
    %131 = vector.extract_strided_slice %4 {offsets = [0, 13], sizes = [8, 1], strides = [1, 1]} : vector<8x16xf32> to vector<8x1xf32>
    %cst_18 = arith.constant 0.000000e+00 : f32
    %132 = vector.shape_cast %131 : vector<8x1xf32> to vector<8x1xf32>
    %133 = vector.broadcast %132 : vector<8x1xf32> to vector<8x128xf32>
    %134 = vector.broadcast %cst_18 : f32 to vector<8x128xf32>
    %135 = arith.select %130, %133, %134 : vector<8x128xi1>, vector<8x128xf32>
    %136 = arith.addf %118, %135 : vector<8x128xf32>
    %137 = vector.extract_strided_slice %8 {offsets = [0, 14], sizes = [8, 1], strides = [1, 1]} : vector<8x16xi32> to vector<8x1xi32>
    %138 = vector.broadcast %137 : vector<8x1xi32> to vector<8x128xi32>
    %139 = arith.cmpi eq, %5, %138 : vector<8x128xi32>
    %140 = vector.extract_strided_slice %4 {offsets = [0, 14], sizes = [8, 1], strides = [1, 1]} : vector<8x16xf32> to vector<8x1xf32>
    %cst_19 = arith.constant 0.000000e+00 : f32
    %141 = vector.shape_cast %140 : vector<8x1xf32> to vector<8x1xf32>
    %142 = vector.broadcast %141 : vector<8x1xf32> to vector<8x128xf32>
    %143 = vector.broadcast %cst_19 : f32 to vector<8x128xf32>
    %144 = arith.select %139, %142, %143 : vector<8x128xi1>, vector<8x128xf32>
    %145 = arith.addf %127, %144 : vector<8x128xf32>
    %146 = vector.extract_strided_slice %8 {offsets = [0, 15], sizes = [8, 1], strides = [1, 1]} : vector<8x16xi32> to vector<8x1xi32>
    %147 = vector.broadcast %146 : vector<8x1xi32> to vector<8x128xi32>
    %148 = arith.cmpi eq, %5, %147 : vector<8x128xi32>
    %149 = vector.extract_strided_slice %4 {offsets = [0, 15], sizes = [8, 1], strides = [1, 1]} : vector<8x16xf32> to vector<8x1xf32>
    %cst_20 = arith.constant 0.000000e+00 : f32
    %150 = vector.shape_cast %149 : vector<8x1xf32> to vector<8x1xf32>
    %151 = vector.broadcast %150 : vector<8x1xf32> to vector<8x128xf32>
    %152 = vector.broadcast %cst_20 : f32 to vector<8x128xf32>
    %153 = arith.select %148, %151, %152 : vector<8x128xi1>, vector<8x128xf32>
    %154 = arith.addf %136, %153 : vector<8x128xf32>
    %155 = arith.addf %145, %154 : vector<8x128xf32>
    %c0_21 = arith.constant 0 : index
    %c0_22 = arith.constant 0 : index
    %156 = vector.load %arg8[%c0_21, %c0_22] : memref<8x128xf32, #tpu.memory_space<vmem>>, vector<8x128xf32>
    %157 = arith.truncf %155 : vector<8x128xf32> to vector<8x128xbf16>
    %c0_23 = arith.constant 0 : index
    %c0_24 = arith.constant 0 : index
    %158 = vector.load %arg4[%c0_23, %c0_24] : memref<128x128xbf16, #tpu.memory_space<vmem>>, vector<128x128xbf16>
    %cst_25 = arith.constant dense<0.000000e+00> : vector<8x128xf32>
    %159 = tpu.matmul %157, %158, %cst_25 {dimension_numbers = #tpu.dot_dimension_numbers<[1], [0], [0], [1], [0, 0, 1, 1], [], []>} : vector<8x128xbf16>, vector<128x128xbf16>, vector<8x128xf32> -> vector<8x128xf32>
    %160 = arith.addf %156, %159 : vector<8x128xf32>
    %c0_26 = arith.constant 0 : index
    %c0_27 = arith.constant 0 : index
    %161 = vector.load %arg8[%c0_26, %c0_27] : memref<8x128xf32, #tpu.memory_space<vmem>>, vector<8x128xf32>
    tpu.vector_store %arg8[%c0_26, %c0_27], %160 {strides = array<i32>} : memref<8x128xf32, #tpu.memory_space<vmem>>, vector<8x128xf32>,
    %c0_i32_28 = arith.constant 0 : i32
    %162 = arith.cmpi eq, %arg1, %c0_i32_28 : i32
    %163 = arith.extui %162 : i1 to i32
    %c0_i32_29 = arith.constant 0 : i32
    %164 = arith.cmpi ne, %163, %c0_i32_29 : i32
    scf.if %164 {
      %c0_30 = arith.constant 0 : index
      %c0_31 = arith.constant 0 : index
      %165 = vector.load %arg8[%c0_30, %c0_31] : memref<8x128xf32, #tpu.memory_space<vmem>>, vector<8x128xf32>
      %166 = arith.truncf %165 : vector<8x128xf32> to vector<8x128xbf16>
      %c0_32 = arith.constant 0 : index
      %c0_33 = arith.constant 0 : index
      %167 = vector.load %arg5[%c0_32, %c0_33] : memref<128x128xbf16, #tpu.memory_space<vmem>>, vector<128x128xbf16>
      %cst_34 = arith.constant dense<0.000000e+00> : vector<8x128xf32>
      %168 = tpu.matmul %166, %167, %cst_34 {dimension_numbers = #tpu.dot_dimension_numbers<[1], [0], [0], [1], [0, 0, 1, 1], [], []>} : vector<8x128xbf16>, vector<128x128xbf16>, vector<8x128xf32> -> vector<8x128xf32>
      %c0_35 = arith.constant 0 : index
      %c0_36 = arith.constant 0 : index
      %169 = vector.load %arg6[%c0_35, %c0_36] : memref<1x128xf32, #tpu.memory_space<vmem>>, vector<1x128xf32>
      %170 = vector.broadcast %169 : vector<1x128xf32> to vector<8x128xf32>
      %171 = arith.addf %168, %170 : vector<8x128xf32>
      %cst_37 = arith.constant 0.000000e+00 : f32
      %172 = vector.broadcast %cst_37 : f32 to vector<8x128xf32>
      %173 = arith.maximumf %171, %172 : vector<8x128xf32>
      %174 = arith.addf %173, %165 : vector<8x128xf32>
      %c0_38 = arith.constant 0 : index
      %c0_39 = arith.constant 0 : index
      %175 = vector.load %arg7[%c0_38, %c0_39] : memref<8x128xf32, #tpu.memory_space<vmem>>, vector<8x128xf32>
      tpu.vector_store %arg7[%c0_38, %c0_39], %174 {strides = array<i32>} : memref<8x128xf32, #tpu.memory_space<vmem>>, vector<8x128xf32>,
    } else {
    }
    return
  }
  func.func @transform_0(%arg0: i32, %arg1: i32) -> (i32, i32) {
    %c0_i32 = arith.constant 0 : i32
    %c0_i32_0 = arith.constant 0 : i32
    return %arg0, %c0_i32 : i32, i32
  }
  func.func @transform_1(%arg0: i32, %arg1: i32) -> (i32, i32) {
    %c0_i32 = arith.constant 0 : i32
    %c0_i32_0 = arith.constant 0 : i32
    return %arg0, %c0_i32 : i32, i32
  }
  func.func @transform_2(%arg0: i32, %arg1: i32) -> (i32, i32) {
    %c0_i32 = arith.constant 0 : i32
    %c0_i32_0 = arith.constant 0 : i32
    return %arg1, %c0_i32 : i32, i32
  }
  func.func @transform_3(%arg0: i32, %arg1: i32) -> (i32, i32) {
    %c0_i32 = arith.constant 0 : i32
    %c0_i32_0 = arith.constant 0 : i32
    %c0_i32_1 = arith.constant 0 : i32
    return %c0_i32, %c0_i32_0 : i32, i32
  }
  func.func @transform_4(%arg0: i32, %arg1: i32) -> (i32, i32) {
    %c0_i32 = arith.constant 0 : i32
    %c0_i32_0 = arith.constant 0 : i32
    %c0_i32_1 = arith.constant 0 : i32
    return %c0_i32, %c0_i32_0 : i32, i32
  }
  func.func @transform_5(%arg0: i32, %arg1: i32) -> (i32, i32) {
    %c0_i32 = arith.constant 0 : i32
    %c0_i32_0 = arith.constant 0 : i32
    return %arg0, %c0_i32 : i32, i32
  }
}

</mosaic_0001>

<llo_original>
// kernel: tpu_custom_call.1
$region0: #{tpu_custom_call.1}
  #allocation0 [shape = 'u32[]', space=smem, size = 0x4, offset = 0x4, fixed_abs, tag = 'smem constant byte address 0x4 - core index']
  #allocation1 [shape = 'u32[144,128]{1,0:T(1,128)}', space=vmem, size = 0x12000, scoped, tag = 'internal scratch']
  #allocation2 [shape = 'f32[8,128]{1,0:T(8,128)}', space=vmem, size = 0x1000, scoped, tag = 'scratch operand']
  %s0 = inlined_call_operand.hbm [shape: s32[8,16], index: 0, kind: input, shape index: {}]
  %s1 = inlined_call_operand.hbm [shape: f32[8,16], index: 1, kind: input, shape index: {}]
  %s2 = inlined_call_operand.hbm [shape: bf16[128,128], index: 2, kind: input, shape index: {}]
  %s3 = inlined_call_operand.hbm [shape: bf16[128,128], index: 3, kind: input, shape index: {}]
  %s4 = inlined_call_operand.vmem [shape: f32[1,128], index: 4, kind: input, shape index: {}]
  %s5 = inlined_call_operand.hbm [shape: f32[8,128], index: 5, kind: output, shape index: {}]
  %s6 = sld [smem:[#allocation0]]
  $region54: #{tpu_custom_call.1} parent=0
    _
  %s8 = ssub.s32 1, %s6
  %s9 = scalar_select 0, %s8, %s6
  $region1: #{tpu_custom_call.1} parent=0
    #allocation3 [shape = 'u8[4096]{0}', space=vmem, size = 0x1000, scoped, tag = 'input window, operand 0, single buffered']
    #allocation4 [shape = 's32[1]{0}', space=sflag, size = 0x4, scoped, tag = 'scoped memory for tpu_custom_call.1']
    #allocation5 [shape = 's32[1]{0}', space=sflag, size = 0x4, scoped, tag = 'scoped memory for tpu_custom_call.1']
    #allocation6 [shape = 'u8[4096]{0}', space=vmem, size = 0x1000, scoped, tag = 'input window, operand 1, single buffered']
    #allocation7 [shape = 's32[1]{0}', space=sflag, size = 0x4, scoped, tag = 'scoped memory for tpu_custom_call.1']
    #allocation8 [shape = 'u8[32768]{0}', space=vmem, size = 0x8000, scoped, tag = 'input window, operand 2, single buffered']
    #allocation9 [shape = 'u8[32768]{0}', space=vmem, size = 0x8000, scoped, tag = 'input window, operand 3, single buffered']
    #allocation10 [shape = 's32[1]{0}', space=sflag, size = 0x4, scoped, tag = 'scoped memory for tpu_custom_call.1']
    #allocation11 [shape = 'u8[4096]{0}', space=vmem, size = 0x1000, scoped, tag = 'output window, operand 0, single buffered']
    %10 = vsyncpa [#allocation4], 0
    %11 = vsyncpa [#allocation7], 0
    %12 = vsyncpa [#allocation10], 0
    %13 = vsyncpa [#allocation5], 0
    // Predicated region
    $region2: #{tpu_custom_call.1} parent=1 // pred_check
      _
    $region3: #{tpu_custom_call.1} parent=1 // pred_check_branch
      %15 = sbr.rel (0) target = $region5
    $region4: #{tpu_custom_call.1} parent=1 // pred_region
      %s17 = ssub.s32 128, 128
      %18 = vsyncadd [#allocation4], %s17
      %s20 = sshll.u32 [#allocation3], 4
      %s21 = int_to_ptr.vmem [resolvable:$true] %s20
      %23 = dma.hbm_to_vmem [thread:$0]  %s0, 128, %s21, [#allocation4]
    $region5: #{tpu_custom_call.1} parent=1 // pred_fallthru
      _
    // Predicated region
    $region6: #{tpu_custom_call.1} parent=1 // pred_check
      _
    $region7: #{tpu_custom_call.1} parent=1 // pred_check_branch
      %25 = sbr.rel (0) target = $region9
    $region8: #{tpu_custom_call.1} parent=1 // pred_region
      %s27 = ssub.s32 128, 128
      %28 = vsyncadd [#allocation7], %s27
      %s30 = sshll.u32 [#allocation6], 4
      %s31 = int_to_ptr.vmem [resolvable:$true] %s30
      %33 = dma.hbm_to_vmem [thread:$0]  %s1, 128, %s31, [#allocation7]
    $region9: #{tpu_custom_call.1} parent=1 // pred_fallthru
      _
    // Predicated region
    $region10: #{tpu_custom_call.1} parent=1 // pred_check
      _
    $region11: #{tpu_custom_call.1} parent=1 // pred_check_branch
      %35 = sbr.rel (0) target = $region13
    $region12: #{tpu_custom_call.1} parent=1 // pred_region
      %s37 = ssub.s32 1024, 1024
      %38 = vsyncadd [#allocation7], %s37
      %s39 = sshll.u32 [#allocation8], 4
      %s40 = int_to_ptr.vmem [resolvable:$true] %s39
      %45 = dma.hbm_to_vmem [thread:$0]  %s2, 1024, %s40, [#allocation7], 64, 64, 4
    $region13: #{tpu_custom_call.1} parent=1 // pred_fallthru
      _
    // Predicated region
    $region14: #{tpu_custom_call.1} parent=1 // pred_check
      _
    $region15: #{tpu_custom_call.1} parent=1 // pred_check_branch
      %47 = sbr.rel (0) target = $region17
    $region16: #{tpu_custom_call.1} parent=1 // pred_region
      %s49 = ssub.s32 1024, 1024
      %50 = vsyncadd [#allocation10], %s49
      %s51 = sshll.u32 [#allocation9], 4
      %s52 = int_to_ptr.vmem [resolvable:$true] %s51
      %57 = dma.hbm_to_vmem [thread:$0]  %s3, 1024, %s52, [#allocation10], 64, 64, 4
    $region17: #{tpu_custom_call.1} parent=1 // pred_fallthru
      _
    // Predicated region
    $region18: #{tpu_custom_call.1} parent=1 // pred_check
      _
    $region19: #{tpu_custom_call.1} parent=1 // pred_check_branch
      %59 = sbr.rel (0) target = $region21
    $region20: #{tpu_custom_call.1} parent=1 // pred_region
      _
    $region21: #{tpu_custom_call.1} parent=1 // pred_fallthru
      _
    // Predicated region
    $region22: #{tpu_custom_call.1} parent=1 // pred_check
      _
    $region23: #{tpu_custom_call.1} parent=1 // pred_check_branch
      %61 = sbr.rel (0) target = $region25
    $region24: #{tpu_custom_call.1} parent=1 // pred_region
      %62 = dma.done [#allocation4], 128
    $region25: #{tpu_custom_call.1} parent=1 // pred_fallthru
      _
    // Predicated region
    $region26: #{tpu_custom_call.1} parent=1 // pred_check
      _
    $region27: #{tpu_custom_call.1} parent=1 // pred_check_branch
      %64 = sbr.rel (0) target = $region29
    $region28: #{tpu_custom_call.1} parent=1 // pred_region
      %65 = dma.done [#allocation7], 128
    $region29: #{tpu_custom_call.1} parent=1 // pred_fallthru
      _
    // Predicated region
    $region30: #{tpu_custom_call.1} parent=1 // pred_check
      _
    $region31: #{tpu_custom_call.1} parent=1 // pred_check_branch
      %67 = sbr.rel (0) target = $region33
    $region32: #{tpu_custom_call.1} parent=1 // pred_region
      %68 = dma.done [#allocation7], 1024
    $region33: #{tpu_custom_call.1} parent=1 // pred_fallthru
      _
    // Predicated region
    $region34: #{tpu_custom_call.1} parent=1 // pred_check
      _
    $region35: #{tpu_custom_call.1} parent=1 // pred_check_branch
      %70 = sbr.rel (0) target = $region37
    $region36: #{tpu_custom_call.1} parent=1 // pred_region
      %71 = dma.done [#allocation10], 1024
    $region37: #{tpu_custom_call.1} parent=1 // pred_fallthru
      _
    %p73 = scmp.eq.s32.totalorder 0, 0
    // Predicated region
    $region38: #{tpu_custom_call.1} parent=1 // pred_check
      %p74 = pneg %p73
    $region39: #{tpu_custom_call.1} parent=1 // pred_check_branch
      %76 = sbr.rel (%p74) target = $region41
    $region40: #{tpu_custom_call.1} parent=1 // pred_region
      %77 = vst [vmem:[#allocation2] sm:$0xff] 0.0
    $region41: #{tpu_custom_call.1} parent=1 // pred_fallthru
      _
    %v78 = vld [vmem:[#allocation3] sm:$0xff]
    %v79 = vld [vmem:[#allocation6] sm:$0xff]
    %v80 = vlaneseq
    %v81 = vand.u32 %v80, 127
    %s82 = smul.u32 0, 128
    %v83 = vstv %s82
    %v84 = vsub.s32 %v78, %v83
    %85 = vset.pattern.permute.xlu0 0
    %86 = vperm.xlu0 %85, %v84
    %v87 = vpop.permute.xlu0 %86
    %vm88 = vcmp.eq.s32.totalorder %v81, %v87
    %90 = vset.pattern.permute.xlu0 0
    %91 = vperm.xlu0 %90, %v79
    %v92 = vpop.permute.xlu0 %91
    %v94 = vsel %vm88, %v92, 0.0
    %v95 = vadd.f32 %v94, 0.0
    %96 = vset.pattern.permute.xlu0 1
    %97 = vperm.xlu0 %96, %v84
    %v98 = vpop.permute.xlu0 %97
    %vm99 = vcmp.eq.s32.totalorder %v81, %v98
    %100 = vset.pattern.permute.xlu0 1
    %101 = vperm.xlu0 %100, %v79
    %v102 = vpop.permute.xlu0 %101
    %v104 = vsel %vm99, %v102, 0.0
    %v105 = vadd.f32 %v104, 0.0
    %106 = vset.pattern.permute.xlu0 2
    %107 = vperm.xlu0 %106, %v84
    %v108 = vpop.permute.xlu0 %107
    %vm109 = vcmp.eq.s32.totalorder %v81, %v108
    %110 = vset.pattern.permute.xlu0 2
    %111 = vperm.xlu0 %110, %v79
    %v112 = vpop.permute.xlu0 %111
    %v114 = vsel %vm109, %v112, 0.0
    %v115 = vadd.f32 %v95, %v114
    %116 = vset.pattern.permute.xlu0 3
    %117 = vperm.xlu0 %116, %v84
    %v118 = vpop.permute.xlu0 %117
    %vm119 = vcmp.eq.s32.totalorder %v81, %v118
    %120 = vset.pattern.permute.xlu0 3
    %121 = vperm.xlu0 %120, %v79
    %v122 = vpop.permute.xlu0 %121
    %v124 = vsel %vm119, %v122, 0.0
    %v125 = vadd.f32 %v105, %v124
    %126 = vset.pattern.permute.xlu0 4
    %127 = vperm.xlu0 %126, %v84
    %v128 = vpop.permute.xlu0 %127
    %vm129 = vcmp.eq.s32.totalorder %v81, %v128
    %130 = vset.pattern.permute.xlu0 4
    %131 = vperm.xlu0 %130, %v79
    %v132 = vpop.permute.xlu0 %131
    %v134 = vsel %vm129, %v132, 0.0
    %v135 = vadd.f32 %v115, %v134
    %136 = vset.pattern.permute.xlu0 5
    %137 = vperm.xlu0 %136, %v84
    %v138 = vpop.permute.xlu0 %137
    %vm139 = vcmp.eq.s32.totalorder %v81, %v138
    %140 = vset.pattern.permute.xlu0 5
    %141 = vperm.xlu0 %140, %v79
    %v142 = vpop.permute.xlu0 %141
    %v144 = vsel %vm139, %v142, 0.0
    %v145 = vadd.f32 %v125, %v144
    %146 = vset.pattern.permute.xlu0 6
    %147 = vperm.xlu0 %146, %v84
    %v148 = vpop.permute.xlu0 %147
    %vm149 = vcmp.eq.s32.totalorder %v81, %v148
    %150 = vset.pattern.permute.xlu0 6
    %151 = vperm.xlu0 %150, %v79
    %v152 = vpop.permute.xlu0 %151
    %v154 = vsel %vm149, %v152, 0.0
    %v155 = vadd.f32 %v135, %v154
    %156 = vset.pattern.permute.xlu0 7
    %157 = vperm.xlu0 %156, %v84
    %v158 = vpop.permute.xlu0 %157
    %vm159 = vcmp.eq.s32.totalorder %v81, %v158
    %160 = vset.pattern.permute.xlu0 7
    %161 = vperm.xlu0 %160, %v79
    %v162 = vpop.permute.xlu0 %161
    %v164 = vsel %vm159, %v162, 0.0
    %v165 = vadd.f32 %v145, %v164
    %166 = vset.pattern.permute.xlu0 8
    %167 = vperm.xlu0 %166, %v84
    %v168 = vpop.permute.xlu0 %167
    %vm169 = vcmp.eq.s32.totalorder %v81, %v168
    %170 = vset.pattern.permute.xlu0 8
    %171 = vperm.xlu0 %170, %v79
    %v172 = vpop.permute.xlu0 %171
    %v174 = vsel %vm169, %v172, 0.0
    %v175 = vadd.f32 %v155, %v174
    %176 = vset.pattern.permute.xlu0 9
    %177 = vperm.xlu0 %176, %v84
    %v178 = vpop.permute.xlu0 %177
    %vm179 = vcmp.eq.s32.totalorder %v81, %v178
    %180 = vset.pattern.permute.xlu0 9
    %181 = vperm.xlu0 %180, %v79
    %v182 = vpop.permute.xlu0 %181
    %v184 = vsel %vm179, %v182, 0.0
    %v185 = vadd.f32 %v165, %v184
    %186 = vset.pattern.permute.xlu0 10
    %187 = vperm.xlu0 %186, %v84
    %v188 = vpop.permute.xlu0 %187
    %vm189 = vcmp.eq.s32.totalorder %v81, %v188
    %190 = vset.pattern.permute.xlu0 10
    %191 = vperm.xlu0 %190, %v79
    %v192 = vpop.permute.xlu0 %191
    %v194 = vsel %vm189, %v192, 0.0
    %v195 = vadd.f32 %v175, %v194
    %196 = vset.pattern.permute.xlu0 11
    %197 = vperm.xlu0 %196, %v84
    %v198 = vpop.permute.xlu0 %197
    %vm199 = vcmp.eq.s32.totalorder %v81, %v198
    %200 = vset.pattern.permute.xlu0 11
    %201 = vperm.xlu0 %200, %v79
    %v202 = vpop.permute.xlu0 %201
    %v204 = vsel %vm199, %v202, 0.0
    %v205 = vadd.f32 %v185, %v204
    %206 = vset.pattern.permute.xlu0 12
    %207 = vperm.xlu0 %206, %v84
    %v208 = vpop.permute.xlu0 %207
    %vm209 = vcmp.eq.s32.totalorder %v81, %v208
    %210 = vset.pattern.permute.xlu0 12
    %211 = vperm.xlu0 %210, %v79
    %v212 = vpop.permute.xlu0 %211
    %v214 = vsel %vm209, %v212, 0.0
    %v215 = vadd.f32 %v195, %v214
    %216 = vset.pattern.permute.xlu0 13
    %217 = vperm.xlu0 %216, %v84
    %v218 = vpop.permute.xlu0 %217
    %vm219 = vcmp.eq.s32.totalorder %v81, %v218
    %220 = vset.pattern.permute.xlu0 13
    %221 = vperm.xlu0 %220, %v79
    %v222 = vpop.permute.xlu0 %221
    %v224 = vsel %vm219, %v222, 0.0
    %v225 = vadd.f32 %v205, %v224
    %226 = vset.pattern.permute.xlu0 14
    %227 = vperm.xlu0 %226, %v84
    %v228 = vpop.permute.xlu0 %227
    %vm229 = vcmp.eq.s32.totalorder %v81, %v228
    %230 = vset.pattern.permute.xlu0 14
    %231 = vperm.xlu0 %230, %v79
    %v232 = vpop.permute.xlu0 %231
    %v234 = vsel %vm229, %v232, 0.0
    %v235 = vadd.f32 %v215, %v234
    %236 = vset.pattern.permute.xlu0 15
    %237 = vperm.xlu0 %236, %v84
    %v238 = vpop.permute.xlu0 %237
    %vm239 = vcmp.eq.s32.totalorder %v81, %v238
    %240 = vset.pattern.permute.xlu0 15
    %241 = vperm.xlu0 %240, %v79
    %v242 = vpop.permute.xlu0 %241
    %v244 = vsel %vm239, %v242, 0.0
    %v245 = vadd.f32 %v225, %v244
    %v246 = vadd.f32 %v235, %v245
    %v247 = vld [vmem:[#allocation2] sm:$0xff]
    %v248 = vpack.c.bf16 %v246, %v246
    %v249 = vld [vmem:[#allocation8] sm:$0xf]
    %v250 = vld [vmem:[#allocation8 + $0x4] sm:$0xf]
    %v251 = vld [vmem:[#allocation8 + $0x8] sm:$0xf]
    %v252 = vld [vmem:[#allocation8 + $0xc] sm:$0xf]
    %v253 = vld [vmem:[#allocation8 + $0x10] sm:$0xf]
    %v254 = vld [vmem:[#allocation8 + $0x14] sm:$0xf]
    %v255 = vld [vmem:[#allocation8 + $0x18] sm:$0xf]
    %v256 = vld [vmem:[#allocation8 + $0x1c] sm:$0xf]
    %v257 = vld [vmem:[#allocation8 + $0x20] sm:$0xf]
    %v258 = vld [vmem:[#allocation8 + $0x24] sm:$0xf]
    %v259 = vld [vmem:[#allocation8 + $0x28] sm:$0xf]
    %v260 = vld [vmem:[#allocation8 + $0x2c] sm:$0xf]
    %v261 = vld [vmem:[#allocation8 + $0x30] sm:$0xf]
    %v262 = vld [vmem:[#allocation8 + $0x34] sm:$0xf]
    %v263 = vld [vmem:[#allocation8 + $0x38] sm:$0xf]
    %v264 = vld [vmem:[#allocation8 + $0x3c] sm:$0xf]
    %v281 = vunpack.c.l.b16 %v249
    %v282 = vunpack.c.l.b16 %v250
    %v283 = vunpack.c.l.b16 %v251
    %v284 = vunpack.c.l.b16 %v252
    %v285 = vunpack.c.l.b16 %v253
    %v286 = vunpack.c.l.b16 %v254
    %v287 = vunpack.c.l.b16 %v255
    %v288 = vunpack.c.l.b16 %v256
    %v289 = vunpack.c.l.b16 %v257
    %v290 = vunpack.c.l.b16 %v258
    %v291 = vunpack.c.l.b16 %v259
    %v292 = vunpack.c.l.b16 %v260
    %v293 = vunpack.c.l.b16 %v261
    %v294 = vunpack.c.l.b16 %v262
    %v295 = vunpack.c.l.b16 %v263
    %v296 = vunpack.c.l.b16 %v264
    %v297 = vpack.c.b16 %v282, %v281
    %v298 = vpack.c.b16 %v284, %v283
    %v299 = vpack.c.b16 %v286, %v285
    %v300 = vpack.c.b16 %v288, %v287
    %v301 = vpack.c.b16 %v290, %v289
    %v302 = vpack.c.b16 %v292, %v291
    %v303 = vpack.c.b16 %v294, %v293
    %v304 = vpack.c.b16 %v296, %v295
    %313 = vmatprep.subr.bf16.mxu0 0
    %314 = vmatpush1.bf16.msra.mxu0 %v297
    %315 = vmatprep.subr.bf16.mxu0 0
    %316 = vmatpush1.bf16.msra.mxu0 %v298
    %317 = vmatprep.subr.bf16.mxu0 0
    %318 = vmatpush1.bf16.msra.mxu0 %v299
    %319 = vmatprep.subr.bf16.mxu0 0
    %320 = vmatpush1.bf16.msra.mxu0 %v300
    %321 = vmatprep.subr.bf16.mxu0 0
    %322 = vmatpush1.bf16.msra.mxu0 %v301
    %323 = vmatprep.subr.bf16.mxu0 0
    %324 = vmatpush1.bf16.msra.mxu0 %v302
    %325 = vmatprep.subr.bf16.mxu0 0
    %326 = vmatpush1.bf16.msra.mxu0 %v303
    %327 = vmatprep.subr.bf16.mxu0 0
    %328 = vmatpush1.bf16.msra.mxu0 %v304
    %329 = vmatprep.subr.bf16.mxu0 0
    %330 = vmatpush1.bf16.msra.mxu0 0
    %331 = vmatprep.subr.bf16.mxu0 0
    %332 = vmatpush1.bf16.msra.mxu0 0
    %333 = vmatprep.subr.bf16.mxu0 0
    %334 = vmatpush1.bf16.msra.mxu0 0
    %335 = vmatprep.subr.bf16.mxu0 0
    %336 = vmatpush1.bf16.msra.mxu0 0
    %337 = vmatprep.subr.bf16.mxu0 0
    %338 = vmatpush1.bf16.msra.mxu0 0
    %339 = vmatprep.subr.bf16.mxu0 0
    %340 = vmatpush1.bf16.msra.mxu0 0
    %341 = vmatprep.subr.bf16.mxu0 0
    %342 = vmatpush1.bf16.msra.mxu0 0
    %343 = vmatprep.subr.bf16.mxu0 0
    %344 = vmatpush1.bf16.msra.mxu0 0
    %345 = vmatprep.mubr.bf16.mxu0 0
    %346 = vmatmul.mubr.bf16.gmra.mrb[0].mxu0 %v248
    %v347 = vpop.f32.mrb[0].mxu0
    %v348 = vadd.f32 0.0, %v347
    %v349 = vpop.f32.mrb[0].mxu0
    %v350 = vpop.f32.mrb[0].mxu0
    %v351 = vpop.f32.mrb[0].mxu0
    %352 = vdwg.mxu0
    %v353 = vadd.f32 %v247, %v348
    %354 = vst [vmem:[#allocation2] sm:$0xff] %v353
    // Predicated region
    $region42: #{tpu_custom_call.1} parent=1 // pred_check
      %p355 = pneg %p73
    $region43: #{tpu_custom_call.1} parent=1 // pred_check_branch
      %357 = sbr.rel (%p355) target = $region45
    $region44: #{tpu_custom_call.1} parent=1 // pred_region
      %v358 = vld [vmem:[#allocation2] sm:$0xff]
      %v359 = vpack.c.bf16 %v358, %v358
      %v360 = vld [vmem:[#allocation9] sm:$0xf]
      %v361 = vld [vmem:[#allocation9 + $0x4] sm:$0xf]
      %v362 = vld [vmem:[#allocation9 + $0x8] sm:$0xf]
      %v363 = vld [vmem:[#allocation9 + $0xc] sm:$0xf]
      %v364 = vld [vmem:[#allocation9 + $0x10] sm:$0xf]
      %v365 = vld [vmem:[#allocation9 + $0x14] sm:$0xf]
      %v366 = vld [vmem:[#allocation9 + $0x18] sm:$0xf]
      %v367 = vld [vmem:[#allocation9 + $0x1c] sm:$0xf]
      %v368 = vld [vmem:[#allocation9 + $0x20] sm:$0xf]
      %v369 = vld [vmem:[#allocation9 + $0x24] sm:$0xf]
      %v370 = vld [vmem:[#allocation9 + $0x28] sm:$0xf]
      %v371 = vld [vmem:[#allocation9 + $0x2c] sm:$0xf]
      %v372 = vld [vmem:[#allocation9 + $0x30] sm:$0xf]
      %v373 = vld [vmem:[#allocation9 + $0x34] sm:$0xf]
      %v374 = vld [vmem:[#allocation9 + $0x38] sm:$0xf]
      %v375 = vld [vmem:[#allocation9 + $0x3c] sm:$0xf]
      %v376 = vld [vmem:[%s4] sm:$0x1]
      %v378 = vlaneseq
      %v379 = vshrl.u32 %v378, 7
      %v380 = vsub.s32 0, %v379
      %v381 = vrot.slane %v376, %v380
      %v399 = vunpack.c.l.b16 %v360
      %v400 = vunpack.c.l.b16 %v361
      %v401 = vunpack.c.l.b16 %v362
      %v402 = vunpack.c.l.b16 %v363
      %v403 = vunpack.c.l.b16 %v364
      %v404 = vunpack.c.l.b16 %v365
      %v405 = vunpack.c.l.b16 %v366
      %v406 = vunpack.c.l.b16 %v367
      %v407 = vunpack.c.l.b16 %v368
      %v408 = vunpack.c.l.b16 %v369
      %v409 = vunpack.c.l.b16 %v370
      %v410 = vunpack.c.l.b16 %v371
      %v411 = vunpack.c.l.b16 %v372
      %v412 = vunpack.c.l.b16 %v373
      %v413 = vunpack.c.l.b16 %v374
      %v414 = vunpack.c.l.b16 %v375
      %v415 = vpack.c.b16 %v400, %v399
      %v416 = vpack.c.b16 %v402, %v401
      %v417 = vpack.c.b16 %v404, %v403
      %v418 = vpack.c.b16 %v406, %v405
      %v419 = vpack.c.b16 %v408, %v407
      %v420 = vpack.c.b16 %v410, %v409
      %v421 = vpack.c.b16 %v412, %v411
      %v422 = vpack.c.b16 %v414, %v413
      %431 = vmatprep.subr.bf16.mxu0 0
      %432 = vmatpush1.bf16.msra.mxu0 %v415
      %433 = vmatprep.subr.bf16.mxu0 0
      %434 = vmatpush1.bf16.msra.mxu0 %v416
      %435 = vmatprep.subr.bf16.mxu0 0
      %436 = vmatpush1.bf16.msra.mxu0 %v417
      %437 = vmatprep.subr.bf16.mxu0 0
      %438 = vmatpush1.bf16.msra.mxu0 %v418
      %439 = vmatprep.subr.bf16.mxu0 0
      %440 = vmatpush1.bf16.msra.mxu0 %v419
      %441 = vmatprep.subr.bf16.mxu0 0
      %442 = vmatpush1.bf16.msra.mxu0 %v420
      %443 = vmatprep.subr.bf16.mxu0 0
      %444 = vmatpush1.bf16.msra.mxu0 %v421
      %445 = vmatprep.subr.bf16.mxu0 0
      %446 = vmatpush1.bf16.msra.mxu0 %v422
      %447 = vmatprep.subr.bf16.mxu0 0
      %448 = vmatpush1.bf16.msra.mxu0 0
      %449 = vmatprep.subr.bf16.mxu0 0
      %450 = vmatpush1.bf16.msra.mxu0 0
      %451 = vmatprep.subr.bf16.mxu0 0
      %452 = vmatpush1.bf16.msra.mxu0 0
      %453 = vmatprep.subr.bf16.mxu0 0
      %454 = vmatpush1.bf16.msra.mxu0 0
      %455 = vmatprep.subr.bf16.mxu0 0
      %456 = vmatpush1.bf16.msra.mxu0 0
      %457 = vmatprep.subr.bf16.mxu0 0
      %458 = vmatpush1.bf16.msra.mxu0 0
      %459 = vmatprep.subr.bf16.mxu0 0
      %460 = vmatpush1.bf16.msra.mxu0 0
      %461 = vmatprep.subr.bf16.mxu0 0
      %462 = vmatpush1.bf16.msra.mxu0 0
      %463 = vmatprep.mubr.bf16.mxu0 0
      %464 = vmatmul.mubr.bf16.gmra.mrb[0].mxu0 %v359
      %v465 = vpop.f32.mrb[0].mxu0
      %v466 = vadd.f32 %v381, %v465
      %v467 = vpop.f32.mrb[0].mxu0
      %v468 = vpop.f32.mrb[0].mxu0
      %v469 = vpop.f32.mrb[0].mxu0
      %470 = vdwg.mxu0
      %v471 = vmax.f32 %v466, 0.0
      %v472 = vadd.f32 %v471, %v358
      %473 = vst [vmem:[#allocation11] sm:$0xff] %v472
    $region45: #{tpu_custom_call.1} parent=1 // pred_fallthru
      _
    // Predicated region
    $region46: #{tpu_custom_call.1} parent=1 // pred_check
      _
    $region47: #{tpu_custom_call.1} parent=1 // pred_check_branch
      %475 = sbr.rel (0) target = $region49
    $region48: #{tpu_custom_call.1} parent=1 // pred_region
      %s477 = ssub.s32 128, 128
      %478 = vsyncadd [#allocation5], %s477
      %s480 = sshll.u32 [#allocation11], 4
      %s481 = int_to_ptr.vmem [resolvable:$true] %s480
      %483 = dma.vmem_to_hbm [thread:$0]  %s481, 128, %s5, [#allocation5]
    $region49: #{tpu_custom_call.1} parent=1 // pred_fallthru
      _
    // Predicated region
    $region50: #{tpu_custom_call.1} parent=1 // pred_check
      _
    $region51: #{tpu_custom_call.1} parent=1 // pred_check_branch
      %485 = sbr.rel (0) target = $region53
    $region52: #{tpu_custom_call.1} parent=1 // pred_region
      %486 = dma.done [#allocation5], 128
    $region53: #{tpu_custom_call.1} parent=1 // pred_fallthru
      _
    %487 = vsyncpa [#allocation4], 1
    %488 = vsyncpa [#allocation7], 1
    %489 = vsyncpa [#allocation10], 1
    %490 = vsyncpa [#allocation5], 1

</llo_original>
